<compile_context>
chip_gen: v6e
topology: v6e:2x2x1
jax: 0.10.0
libtpu: 0.0.40
codegen_flags: <defaults>
</compile_context>

<pallas_src>
import jax
import jax.numpy as jnp
from jax.experimental import pallas as pl
from jax.experimental.pallas import tpu as pltpu

# Static problem sizes (from the PyTorch module)
B = 1
C_IN, C_MID, C_OUT = 7, 7, 8
L_IN = 6
K = 3
L1 = L_IN - K + 1    # 4  (conv1 output length)
L2 = L1 - K + 1      # 2  (conv2 output length)
EPS = 1e-5

PARAM_ROWS = 56      # 24 (w1 taps) + 24 (w2 taps) + 8 (BN affine block)


def _bn_relu(c, gamma, beta):
    """Training-mode BatchNorm1d (batch stats over the length axis, N=1, biased
    variance) fused to scale/shift form, followed by ReLU."""
    mean = jnp.mean(c, axis=1, keepdims=True)
    diff = c - mean
    var = jnp.mean(diff * diff, axis=1, keepdims=True)
    inv = jax.lax.rsqrt(var + EPS)          # EUP
    scale = gamma * inv                     # per-channel (8,1)
    shift = beta - mean * scale             # per-channel (8,1)
    return jnp.maximum(c * scale + shift, 0.0)


def model_kernel(x_ref, p_ref, t1_ref, t2_ref, y_ref, xs_ref):
    # ---- build the guaranteed-zero padded (8,8) x slab in-kernel ------------
    xs_ref[...] = jnp.zeros((8, 8), jnp.float32)
    xs_ref[0:C_IN, 0:L_IN] = x_ref[0]         # masked sub-tile store
    x = xs_ref[...]                            # (8, 8): rows 0:7 real, cols 0:6 real

    # Pre-packed, sublane-aligned weight blocks (no 3-D lane slicing in-kernel).
    w1t = p_ref[0:24, :]                       # (24, 8)  rows k*8+co = w1[co, :, k]
    w2t = p_ref[24:48, :]                      # (24, 8)  rows k*8+co = w2[co, :, k]
    g1 = p_ref[48:56, 0:1]                     # (8, 1)
    b1 = p_ref[48:56, 1:2]
    g2 = p_ref[48:56, 2:3]
    b2 = p_ref[48:56, 3:4]

    # ---- stage 1: conv1 (single contraction + shifted adds) -> bn1 -> relu ----
    # e1[k*8+co, p] = sum_ci w1[co,ci,k] * x[ci,p]
    e1 = jnp.dot(w1t, x, preferred_element_type=jnp.float32)        # (24, 8)
    c1 = e1[0:8, 0:4] + e1[8:16, 1:5] + e1[16:24, 2:6]              # (8, 4)
    t1 = _bn_relu(c1, g1, b1)                                       # (8, 4)  row 7 = 0 pad

    # ---- stage 2: conv2 -> bn2 -> relu ----
    e2 = jnp.dot(w2t, t1, preferred_element_type=jnp.float32)       # (24, 4)
    c2 = e2[0:8, 0:2] + e2[8:16, 1:3] + e2[16:24, 2:4]              # (8, 2)
    t2 = _bn_relu(c2, g2, b2)                                       # (8, 2)

    # ---- tanh head ----
    y = jnp.tanh(t2)                                                # (8, 2)  (EUP)

    # Direct small outputs (masked stores) -> no wrapper slicing afterwards.
    t1_ref[0] = t1[0:C_MID, :]                                      # (7, 4)
    t2_ref[0] = t2                                                  # (8, 2)
    y_ref[0] = y                                                    # (8, 2)


def pack_params(params):
    """Pack all parameters into ONE (56, 8) f32 slab (one input DMA).

    Rows  0:24 -> w1 taps:  slab[k*8+co, ci] = w1[co, ci, k]  (co<7, ci<7, rest 0)
    Rows 24:48 -> w2 taps:  slab[24+k*8+co, ci] = w2[co, ci, k]  (ci<7, rest 0)
    Rows 48:56 -> BN affine columns: [gamma1, beta1, gamma2, beta2]
    Conv biases b1/b2 are intentionally dropped: they cancel exactly under
    training-mode BatchNorm (batch mean shifts by the same per-channel const).
    """
    w1, b1, g1, be1, w2, b2, g2, be2 = params
    del b1, b2  # exact cancellation under training-mode BN

    slab = jnp.zeros((PARAM_ROWS, 8), jnp.float32)

    w1t = jnp.zeros((K, 8, 8), jnp.float32).at[:, :C_MID, :C_IN].set(
        jnp.transpose(w1, (2, 0, 1)))
    slab = slab.at[0:24, :].set(w1t.reshape(K * 8, 8))

    w2t = jnp.zeros((K, 8, 8), jnp.float32).at[:, :C_OUT, :C_MID].set(
        jnp.transpose(w2, (2, 0, 1)))
    slab = slab.at[24:48, :].set(w2t.reshape(K * 8, 8))

    bn = jnp.zeros((8, 8), jnp.float32)
    bn = bn.at[:C_MID, 0].set(g1).at[:C_MID, 1].set(be1)
    bn = bn.at[:C_OUT, 2].set(g2).at[:C_OUT, 3].set(be2)
    slab = slab.at[48:56, 0:8].set(bn)
    return slab


@jax.jit
def model_forward(x, packed_params):
    """x: (1, 7, 6) float32. Returns (t1, t2, y) = (1,7,4), (1,8,2), (1,8,2).

    The jitted wrapper is exactly one Pallas custom call: no host-side pad, no
    post-call slicing (padding and output splitting happen inside the kernel).
    """
    vmem = pl.BlockSpec(memory_space=pltpu.MemorySpace.VMEM)
    return pl.pallas_call(
        model_kernel,
        out_shape=(
            jax.ShapeDtypeStruct((B, C_MID, L1), jnp.float32),
            jax.ShapeDtypeStruct((B, C_OUT, L2), jnp.float32),
            jax.ShapeDtypeStruct((B, C_OUT, L2), jnp.float32),
        ),
        in_specs=[vmem, vmem],
        out_specs=(vmem, vmem, vmem),
        scratch_shapes=[pltpu.VMEM((8, 8), jnp.float32)],   # padded-x slab
        cost_estimate=pl.CostEstimate(
            flops=2100, transcendentals=32, bytes_accessed=2304),
    )(x, packed_params)
    # TODO(synk): BatchNorm running_mean/running_var updates (training-mode
    # side effect of the nn.Module) are not materialized; only the tensors
    # returned by forward() are computed.


def init_params():
    """Deterministic synthetic parameters (shapes match the PyTorch module)."""
    key = jax.random.PRNGKey(0)
    k1, k2, k3, k4 = jax.random.split(key, 4)
    w1 = jax.random.normal(k1, (C_MID, C_IN, K), jnp.float32) * 0.2
    b1 = jax.random.normal(k2, (C_MID,), jnp.float32) * 0.1
    w2 = jax.random.normal(k3, (C_OUT, C_MID, K), jnp.float32) * 0.2
    b2 = jax.random.normal(k4, (C_OUT,), jnp.float32) * 0.1
    g1 = jnp.ones((C_MID,), jnp.float32)
    be1 = jnp.zeros((C_MID,), jnp.float32)
    g2 = jnp.ones((C_OUT,), jnp.float32)
    be2 = jnp.zeros((C_OUT,), jnp.float32)
    return (w1, b1, g1, be1, w2, b2, g2, be2)


def _reference(x, params):
    """Pure-JAX reference (includes conv biases; proves the bias-drop is exact)."""
    w1, b1, g1, be1, w2, b2, g2, be2 = params

    def conv(w, b, x2d):
        k = w.shape[2]
        l_out = x2d.shape[1] - k + 1
        acc = b[:, None]
        for kk in range(k):
            acc = acc + jnp.dot(w[:, :, kk], x2d[:, kk:kk + l_out])
        return acc

    def bn(c, g, be):
        m = jnp.mean(c, axis=1, keepdims=True)
        v = jnp.mean((c - m) ** 2, axis=1, keepdims=True)
        return g[:, None] * (c - m) * jax.lax.rsqrt(v + EPS) + be[:, None]

    t1 = jnp.maximum(bn(conv(w1, b1, x[0]), g1, be1), 0.0)
    t2 = jnp.maximum(bn(conv(w2, b2, t1), g2, be2), 0.0)
    return t1[None], t2[None], jnp.tanh(t2)[None]


if __name__ == "__main__":
    params = init_params()
    packed = pack_params(params)

    # Packing invariants the kernel's padded rows/lanes depend on.
    assert bool(jnp.all(packed[jnp.array([7, 15, 23]), :] == 0.0))   # w1 taps co==7
    assert bool(jnp.all(packed[24:48, 7] == 0.0))                    # w2 taps ci==7
    assert float(packed[48 + 7, 0]) == 0.0                           # gamma1 ch-7 pad
    assert float(packed[48 + 7, 1]) == 0.0                           # beta1  ch-7 pad

    x = jax.random.normal(jax.random.PRNGKey(0), (B, C_IN, L_IN), jnp.float32)

    t1, t2, y = model_forward(x, packed)
    jax.block_until_ready((t1, t2, y))

    assert t1.shape == (1, C_MID, L1)
    assert t2.shape == (1, C_OUT, L2)
    assert y.shape == (1, C_OUT, L2)

    rt1, rt2, ry = _reference(x, params)
    assert bool(jnp.allclose(t1, rt1, atol=1e-4, rtol=1e-4))
    assert bool(jnp.allclose(t2, rt2, atol=1e-4, rtol=1e-4))
    assert bool(jnp.allclose(y, ry, atol=1e-4, rtol=1e-4))

    print("KERNEL_OK")
</pallas_src>

<mosaic_0001>
module attributes {stable_mosaic.version = 11 : i64} {
  func.func @model_kernel(%arg0: memref<1x7x6xf32, #tpu.memory_space<vmem>>, %arg1: memref<56x8xf32, #tpu.memory_space<vmem>>, %arg2: memref<1x7x4xf32, #tpu.memory_space<vmem>>, %arg3: memref<1x8x2xf32, #tpu.memory_space<vmem>>, %arg4: memref<1x8x2xf32, #tpu.memory_space<vmem>>, %arg5: memref<8x8xf32, #tpu.memory_space<vmem>>) attributes {dimension_semantics = [], scalar_prefetch = 0 : i64, scratch_operands = 1 : i64, tpu.core_type = #tpu.core_type<tc>} {
    %cst = arith.constant 0.000000e+00 : f32
    %0 = vector.broadcast %cst : f32 to vector<8x8xf32>
    %c0 = arith.constant 0 : index
    %c0_0 = arith.constant 0 : index
    %1 = vector.load %arg5[%c0, %c0_0] : memref<8x8xf32, #tpu.memory_space<vmem>>, vector<8x8xf32>
    tpu.vector_store %arg5[%c0, %c0_0], %0 {strides = array<i32>} : memref<8x8xf32, #tpu.memory_space<vmem>>, vector<8x8xf32>,
    %c0_1 = arith.constant 0 : index
    %c0_2 = arith.constant 0 : index
    %c0_3 = arith.constant 0 : index
    %2 = vector.load %arg0[%c0_1, %c0_2, %c0_3] : memref<1x7x6xf32, #tpu.memory_space<vmem>>, vector<1x7x6xf32>
    %3 = vector.shape_cast %2 : vector<1x7x6xf32> to vector<7x6xf32>
    %c0_4 = arith.constant 0 : index
    %c0_5 = arith.constant 0 : index
    %4 = vector.load %arg5[%c0_4, %c0_5] : memref<8x8xf32, #tpu.memory_space<vmem>>, vector<7x6xf32>
    tpu.vector_store %arg5[%c0_4, %c0_5], %3 {strides = array<i32>} : memref<8x8xf32, #tpu.memory_space<vmem>>, vector<7x6xf32>,
    %c0_6 = arith.constant 0 : index
    %c0_7 = arith.constant 0 : index
    %5 = vector.load %arg5[%c0_6, %c0_7] : memref<8x8xf32, #tpu.memory_space<vmem>>, vector<8x8xf32>
    %c0_8 = arith.constant 0 : index
    %c0_9 = arith.constant 0 : index
    %6 = vector.load %arg1[%c0_8, %c0_9] : memref<56x8xf32, #tpu.memory_space<vmem>>, vector<24x8xf32>
    %c24 = arith.constant 24 : index
    %c0_10 = arith.constant 0 : index
    %7 = vector.load %arg1[%c24, %c0_10] : memref<56x8xf32, #tpu.memory_space<vmem>>, vector<24x8xf32>
    %c48 = arith.constant 48 : index
    %c0_11 = arith.constant 0 : index
    %8 = vector.load %arg1[%c48, %c0_11] : memref<56x8xf32, #tpu.memory_space<vmem>>, vector<8x1xf32>
    %c48_12 = arith.constant 48 : index
    %c1 = arith.constant 1 : index
    %9 = vector.load %arg1[%c48_12, %c1] : memref<56x8xf32, #tpu.memory_space<vmem>>, vector<8x1xf32>
    %c48_13 = arith.constant 48 : index
    %c2 = arith.constant 2 : index
    %10 = vector.load %arg1[%c48_13, %c2] : memref<56x8xf32, #tpu.memory_space<vmem>>, vector<8x1xf32>
    %c48_14 = arith.constant 48 : index
    %c3 = arith.constant 3 : index
    %11 = vector.load %arg1[%c48_14, %c3] : memref<56x8xf32, #tpu.memory_space<vmem>>, vector<8x1xf32>
    %cst_15 = arith.constant dense<0.000000e+00> : vector<24x8xf32>
    %12 = tpu.matmul %6, %5, %cst_15 {dimension_numbers = #tpu.dot_dimension_numbers<[1], [0], [0], [1], [0, 0, 1, 1], [], []>} : vector<24x8xf32>, vector<8x8xf32>, vector<24x8xf32> -> vector<24x8xf32>
    %13 = vector.extract_strided_slice %12 {offsets = [0, 0], sizes = [8, 4], strides = [1, 1]} : vector<24x8xf32> to vector<8x4xf32>
    %14 = vector.extract_strided_slice %12 {offsets = [8, 1], sizes = [8, 4], strides = [1, 1]} : vector<24x8xf32> to vector<8x4xf32>
    %15 = arith.addf %13, %14 : vector<8x4xf32>
    %16 = vector.extract_strided_slice %12 {offsets = [16, 2], sizes = [8, 4], strides = [1, 1]} : vector<24x8xf32> to vector<8x4xf32>
    %17 = arith.addf %15, %16 : vector<8x4xf32>
    %cst_16 = arith.constant dense<0.000000e+00> : vector<8xf32>
    %18 = vector.multi_reduction <add>, %17, %cst_16 [1] : vector<8x4xf32> to vector<8xf32>
    %19 = vector.shape_cast %18 : vector<8xf32> to vector<8x1xf32>
    %cst_17 = arith.constant 4.000000e+00 : f32
    %20 = vector.broadcast %cst_17 : f32 to vector<8x1xf32>
    %21 = arith.divf %19, %20 : vector<8x1xf32>
    %22 = vector.broadcast %21 : vector<8x1xf32> to vector<8x4xf32>
    %23 = arith.subf %17, %22 : vector<8x4xf32>
    %24 = arith.mulf %23, %23 : vector<8x4xf32>
    %cst_18 = arith.constant dense<0.000000e+00> : vector<8xf32>
    %25 = vector.multi_reduction <add>, %24, %cst_18 [1] : vector<8x4xf32> to vector<8xf32>
    %26 = vector.shape_cast %25 : vector<8xf32> to vector<8x1xf32>
    %cst_19 = arith.constant 4.000000e+00 : f32
    %27 = vector.broadcast %cst_19 : f32 to vector<8x1xf32>
    %28 = arith.divf %26, %27 : vector<8x1xf32>
    %cst_20 = arith.constant 9.99999974E-6 : f32
    %29 = vector.broadcast %cst_20 : f32 to vector<8x1xf32>
    %30 = arith.addf %28, %29 : vector<8x1xf32>
    %31 = math.rsqrt %30 : vector<8x1xf32>
    %32 = arith.mulf %8, %31 : vector<8x1xf32>
    %33 = arith.mulf %21, %32 : vector<8x1xf32>
    %34 = arith.subf %9, %33 : vector<8x1xf32>
    %35 = vector.broadcast %32 : vector<8x1xf32> to vector<8x4xf32>
    %36 = arith.mulf %17, %35 : vector<8x4xf32>
    %37 = vector.broadcast %34 : vector<8x1xf32> to vector<8x4xf32>
    %38 = arith.addf %36, %37 : vector<8x4xf32>
    %cst_21 = arith.constant 0.000000e+00 : f32
    %39 = vector.broadcast %cst_21 : f32 to vector<8x4xf32>
    %40 = arith.maximumf %38, %39 : vector<8x4xf32>
    %cst_22 = arith.constant dense<0.000000e+00> : vector<24x4xf32>
    %41 = tpu.matmul %7, %40, %cst_22 {dimension_numbers = #tpu.dot_dimension_numbers<[1], [0], [0], [1], [0, 0, 1, 1], [], []>} : vector<24x8xf32>, vector<8x4xf32>, vector<24x4xf32> -> vector<24x4xf32>
    %42 = vector.extract_strided_slice %41 {offsets = [0, 0], sizes = [8, 2], strides = [1, 1]} : vector<24x4xf32> to vector<8x2xf32>
    %43 = vector.extract_strided_slice %41 {offsets = [8, 1], sizes = [8, 2], strides = [1, 1]} : vector<24x4xf32> to vector<8x2xf32>
    %44 = arith.addf %42, %43 : vector<8x2xf32>
    %45 = vector.extract_strided_slice %41 {offsets = [16, 2], sizes = [8, 2], strides = [1, 1]} : vector<24x4xf32> to vector<8x2xf32>
    %46 = arith.addf %44, %45 : vector<8x2xf32>
    %cst_23 = arith.constant dense<0.000000e+00> : vector<8xf32>
    %47 = vector.multi_reduction <add>, %46, %cst_23 [1] : vector<8x2xf32> to vector<8xf32>
    %48 = vector.shape_cast %47 : vector<8xf32> to vector<8x1xf32>
    %cst_24 = arith.constant 2.000000e+00 : f32
    %49 = vector.broadcast %cst_24 : f32 to vector<8x1xf32>
    %50 = arith.divf %48, %49 : vector<8x1xf32>
    %51 = vector.broadcast %50 : vector<8x1xf32> to vector<8x2xf32>
    %52 = arith.subf %46, %51 : vector<8x2xf32>
    %53 = arith.mulf %52, %52 : vector<8x2xf32>
    %cst_25 = arith.constant dense<0.000000e+00> : vector<8xf32>
    %54 = vector.multi_reduction <add>, %53, %cst_25 [1] : vector<8x2xf32> to vector<8xf32>
    %55 = vector.shape_cast %54 : vector<8xf32> to vector<8x1xf32>
    %cst_26 = arith.constant 2.000000e+00 : f32
    %56 = vector.broadcast %cst_26 : f32 to vector<8x1xf32>
    %57 = arith.divf %55, %56 : vector<8x1xf32>
    %cst_27 = arith.constant 9.99999974E-6 : f32
    %58 = vector.broadcast %cst_27 : f32 to vector<8x1xf32>
    %59 = arith.addf %57, %58 : vector<8x1xf32>
    %60 = math.rsqrt %59 : vector<8x1xf32>
    %61 = arith.mulf %10, %60 : vector<8x1xf32>
    %62 = arith.mulf %50, %61 : vector<8x1xf32>
    %63 = arith.subf %11, %62 : vector<8x1xf32>
    %64 = vector.broadcast %61 : vector<8x1xf32> to vector<8x2xf32>
    %65 = arith.mulf %46, %64 : vector<8x2xf32>
    %66 = vector.broadcast %63 : vector<8x1xf32> to vector<8x2xf32>
    %67 = arith.addf %65, %66 : vector<8x2xf32>
    %cst_28 = arith.constant 0.000000e+00 : f32
    %68 = vector.broadcast %cst_28 : f32 to vector<8x2xf32>
    %69 = arith.maximumf %67, %68 : vector<8x2xf32>
    %70 = math.tanh %69 : vector<8x2xf32>
    %71 = vector.extract_strided_slice %40 {offsets = [0, 0], sizes = [7, 4], strides = [1, 1]} : vector<8x4xf32> to vector<7x4xf32>
    %c0_29 = arith.constant 0 : index
    %c0_30 = arith.constant 0 : index
    %c0_31 = arith.constant 0 : index
    %72 = vector.load %arg2[%c0_29, %c0_30, %c0_31] : memref<1x7x4xf32, #tpu.memory_space<vmem>>, vector<1x7x4xf32>
    %73 = vector.shape_cast %72 : vector<1x7x4xf32> to vector<7x4xf32>
    %74 = vector.shape_cast %71 : vector<7x4xf32> to vector<1x7x4xf32>
    tpu.vector_store %arg2[%c0_29, %c0_30, %c0_31], %74 {strides = array<i32>} : memref<1x7x4xf32, #tpu.memory_space<vmem>>, vector<1x7x4xf32>,
    %c0_32 = arith.constant 0 : index
    %c0_33 = arith.constant 0 : index
    %c0_34 = arith.constant 0 : index
    %75 = vector.load %arg3[%c0_32, %c0_33, %c0_34] : memref<1x8x2xf32, #tpu.memory_space<vmem>>, vector<1x8x2xf32>
    %76 = vector.shape_cast %75 : vector<1x8x2xf32> to vector<8x2xf32>
    %77 = vector.shape_cast %69 : vector<8x2xf32> to vector<1x8x2xf32>
    tpu.vector_store %arg3[%c0_32, %c0_33, %c0_34], %77 {strides = array<i32>} : memref<1x8x2xf32, #tpu.memory_space<vmem>>, vector<1x8x2xf32>,
    %c0_35 = arith.constant 0 : index
    %c0_36 = arith.constant 0 : index
    %c0_37 = arith.constant 0 : index
    %78 = vector.load %arg4[%c0_35, %c0_36, %c0_37] : memref<1x8x2xf32, #tpu.memory_space<vmem>>, vector<1x8x2xf32>
    %79 = vector.shape_cast %78 : vector<1x8x2xf32> to vector<8x2xf32>
    %80 = vector.shape_cast %70 : vector<8x2xf32> to vector<1x8x2xf32>
    tpu.vector_store %arg4[%c0_35, %c0_36, %c0_37], %80 {strides = array<i32>} : memref<1x8x2xf32, #tpu.memory_space<vmem>>, vector<1x8x2xf32>,
    return
  }
}

</mosaic_0001>

<llo_original>
// kernel: model_forward.1
$region0: #{model_forward.1}
  #allocation0 [shape = 'u32[]', space=smem, size = 0x4, offset = 0x4, fixed_abs, tag = 'smem constant byte address 0x4 - core index']
  #allocation1 [shape = 'u32[144,128]{1,0:T(1,128)}', space=vmem, size = 0x12000, scoped, tag = 'internal scratch']
  #allocation2 [shape = 'f32[8,8]{1,0:T(8,128)}', space=vmem, size = 0x1000, scoped, tag = 'scratch operand']
  %s0 = inlined_call_operand.vmem [shape: f32[1,7,6], index: 0, kind: input, shape index: {}]
  %s1 = inlined_call_operand.vmem [shape: f32[56,8], index: 1, kind: input, shape index: {}]
  %s2 = inlined_call_operand.vmem [shape: f32[1,7,4], index: 2, kind: output, shape index: {0}]
  %s3 = inlined_call_operand.vmem [shape: f32[1,8,2], index: 3, kind: output, shape index: {1}]
  %s4 = inlined_call_operand.vmem [shape: f32[1,8,2], index: 4, kind: output, shape index: {2}]
  %5 = xla_tuple %s2, %s3, %s4
  %s6 = sld [smem:[#allocation0]]
  $region34: #{model_forward.1} parent=0
    _
  %s8 = ssub.s32 1, %s6
  %s9 = scalar_select 0, %s8, %s6
  // Predicated region
  $region2: #{model_forward.1} parent=0 // pred_check
    _
  $region3: #{model_forward.1} parent=0 // pred_check_branch
    %11 = sbr.rel (0) target = $region5
  $region4: #{model_forward.1} parent=0 // pred_region
    _
  $region5: #{model_forward.1} parent=0 // pred_fallthru
    _
  // Predicated region
  $region6: #{model_forward.1} parent=0 // pred_check
    _
  $region7: #{model_forward.1} parent=0 // pred_check_branch
    %13 = sbr.rel (0) target = $region9
  $region8: #{model_forward.1} parent=0 // pred_region
    _
  $region9: #{model_forward.1} parent=0 // pred_fallthru
    _
  %vm14 = vcmask 64512
  %15 = vst.msk [vmem:[#allocation2] sm:$0xff] %vm14, 0.0
  %v16 = vld [vmem:[%s0] sm:$0x7f]
  %vm17 = vcmask 47104
  %18 = vst.msk [vmem:[#allocation2] sm:$0x7f] %vm17, %v16
  %v19 = vld [vmem:[#allocation2] sm:$0xff]
  %v20 = vld [vmem:[%s1] sm:$0xff]
  %v21 = vld [vmem:[%s1 + $0x8] sm:$0xff]
  %v22 = vld [vmem:[%s1 + $0x10] sm:$0xff]
  %v23 = vld [vmem:[%s1 + $0x18] sm:$0xff]
  %v24 = vld [vmem:[%s1 + $0x20] sm:$0xff]
  %v25 = vld [vmem:[%s1 + $0x28] sm:$0xff]
  %v26 = vld [vmem:[%s1 + $0x30] sm:$0xff]
  %v28 = vsel %vm14, %v20, 0
  %v31 = vsel %vm14, %v21, 0
  %v34 = vsel %vm14, %v22, 0
  %36 = vmatprep.subr.mxu0 0.0
  %37 = vmatpush1.msra.mxu0 0.0
  %38 = vmatprep.subr.mxu0 0.0
  %39 = vmatpush1.msra.mxu0 0.0
  %40 = vmatprep.subr.mxu0 0.0
  %41 = vmatpush1.msra.mxu0 0.0
  %42 = vmatprep.subr.mxu0 0.0
  %43 = vmatpush1.msra.mxu0 0.0
  %44 = vmatprep.subr.mxu0 0.0
  %45 = vmatpush1.msra.mxu0 0.0
  %46 = vmatprep.subr.mxu0 0.0
  %47 = vmatpush1.msra.mxu0 0.0
  %48 = vmatprep.subr.mxu0 0.0
  %49 = vmatpush1.msra.mxu0 0.0
  %50 = vmatprep.subr.mxu0 0.0
  %51 = vmatpush1.msra.mxu0 0.0
  %52 = vmatprep.subr.mxu0 0.0
  %53 = vmatpush1.msra.mxu0 0.0
  %54 = vmatprep.subr.mxu0 0.0
  %55 = vmatpush1.msra.mxu0 0.0
  %56 = vmatprep.subr.mxu0 0.0
  %57 = vmatpush1.msra.mxu0 0.0
  %58 = vmatprep.subr.mxu0 0.0
  %59 = vmatpush1.msra.mxu0 0.0
  %60 = vmatprep.subr.mxu0 0.0
  %61 = vmatpush1.msra.mxu0 0.0
  %62 = vmatprep.subr.mxu0 0.0
  %63 = vmatpush1.msra.mxu0 0.0
  %64 = vmatprep.subr.mxu0 0.0
  %65 = vmatpush1.msra.mxu0 0.0
  %66 = vmatprep.subr.mxu0 0.0
  %67 = vmatpush1.msra.mxu0 %v19
  %68 = vmatprep.subr.mxu0 0.0
  %69 = vmatpush2.msra.mxu0 0.0
  %70 = vmatprep.subr.mxu0 0.0
  %71 = vmatpush2.msra.mxu0 0.0
  %72 = vmatprep.subr.mxu0 0.0
  %73 = vmatpush2.msra.mxu0 0.0
  %74 = vmatprep.subr.mxu0 0.0
  %75 = vmatpush2.msra.mxu0 0.0
  %76 = vmatprep.subr.mxu0 0.0
  %77 = vmatpush2.msra.mxu0 0.0
  %78 = vmatprep.subr.mxu0 0.0
  %79 = vmatpush2.msra.mxu0 0.0
  %80 = vmatprep.subr.mxu0 0.0
  %81 = vmatpush2.msra.mxu0 0.0
  %82 = vmatprep.subr.mxu0 0.0
  %83 = vmatpush2.msra.mxu0 0.0
  %84 = vmatprep.subr.mxu0 0.0
  %85 = vmatpush2.msra.mxu0 0.0
  %86 = vmatprep.subr.mxu0 0.0
  %87 = vmatpush2.msra.mxu0 0.0
  %88 = vmatprep.subr.mxu0 0.0
  %89 = vmatpush2.msra.mxu0 0.0
  %90 = vmatprep.subr.mxu0 0.0
  %91 = vmatpush2.msra.mxu0 0.0
  %92 = vmatprep.subr.mxu0 0.0
  %93 = vmatpush2.msra.mxu0 0.0
  %94 = vmatprep.subr.mxu0 0.0
  %95 = vmatpush2.msra.mxu0 0.0
  %96 = vmatprep.subr.mxu0 0.0
  %97 = vmatpush2.msra.mxu0 0.0
  %98 = vmatprep.subr.mxu0 0.0
  %99 = vmatpush2.msra.mxu0 0.0
  %100 = vmatprep.mubr.f32.mxu0 0.0
  %101 = vmatmul.mubr.f32.gmra.mxu0 %v28
  %v102 = vpop.f32.mrf.mxu0
  %v103 = vadd.f32 0.0, %v102
  %v104 = vpop.f32.mrf.mxu0
  %105 = vmatprep.mubr.f32.mxu0 0.0
  %106 = vmatmul.mubr.f32.gmra.mxu0 %v31
  %v107 = vpop.f32.mrf.mxu0
  %v108 = vadd.f32 0.0, %v107
  %v109 = vpop.f32.mrf.mxu0
  %110 = vmatprep.mubr.f32.mxu0 0.0
  %111 = vmatmul.mubr.f32.gmra.mxu0 %v34
  %v112 = vpop.f32.mrf.mxu0
  %v113 = vadd.f32 0.0, %v112
  %v114 = vpop.f32.mrf.mxu0
  %115 = vdwg.mxu0
  %117 = vrot.lane.b32.xlu0 %v108, 127
  %v118 = vpop.permute.xlu0 %117
  %v120 = vadd.f32 %v103, %v118
  %122 = vrot.lane.b32.xlu0 %v113, 126
  %v123 = vpop.permute.xlu0 %122
  %v125 = vadd.f32 %v120, %v123
  %vm126 = vcmask 31744
  %v127 = vsel %vm126, %v125, 0.0
  %128 = vadd.xlane.f32.xlu0 %v127
  %v129 = vpop.xlane.xlu0 %128
  %v130 = vrcp.pop 4.0
  %v131 = vmul.f32 %v129, %v130
  %v132 = vsub.f32 %v125, %v131
  %v133 = vmul.f32 %v132, %v132
  %v134 = vsel %vm126, %v133, 0.0
  %135 = vadd.xlane.f32.xlu0 %v134
  %v136 = vpop.xlane.xlu0 %135
  %v137 = vmul.f32 %v136, %v130
  %v138 = vadd.f32 %v137, 1e-05
  %v139 = vrsqrt.pop %v138
  %v140 = vmul.f32 %v26, %v139
  %v141 = vmul.f32 %v131, %v140
  %143 = vrot.lane.b32.xlu0 %v141, 1
  %v144 = vpop.permute.xlu0 %143
  %v146 = vsub.f32 %v26, %v144
  %148 = vset.pattern.permute.xlu0 0
  %149 = vperm.xlu0 %148, %v140
  %v150 = vpop.permute.xlu0 %149
  %v152 = vmul.f32 %v125, %v150
  %154 = vset.pattern.permute.xlu0 1
  %155 = vperm.xlu0 %154, %v146
  %v156 = vpop.permute.xlu0 %155
  %v158 = vadd.f32 %v152, %v156
  %v159 = vmax.f32 %v158, 0.0
  %v161 = vsel %vm14, %v23, 0
  %v164 = vsel %vm14, %v24, 0
  %v167 = vsel %vm14, %v25, 0
  %169 = vmatprep.subr.mxu0 0.0
  %170 = vmatpush1.msra.mxu0 0.0
  %171 = vmatprep.subr.mxu0 0.0
  %172 = vmatpush1.msra.mxu0 0.0
  %173 = vmatprep.subr.mxu0 0.0
  %174 = vmatpush1.msra.mxu0 0.0
  %175 = vmatprep.subr.mxu0 0.0
  %176 = vmatpush1.msra.mxu0 0.0
  %177 = vmatprep.subr.mxu0 0.0
  %178 = vmatpush1.msra.mxu0 0.0
  %179 = vmatprep.subr.mxu0 0.0
  %180 = vmatpush1.msra.mxu0 0.0
  %181 = vmatprep.subr.mxu0 0.0
  %182 = vmatpush1.msra.mxu0 0.0
  %183 = vmatprep.subr.mxu0 0.0
  %184 = vmatpush1.msra.mxu0 0.0
  %185 = vmatprep.subr.mxu0 0.0
  %186 = vmatpush1.msra.mxu0 0.0
  %187 = vmatprep.subr.mxu0 0.0
  %188 = vmatpush1.msra.mxu0 0.0
  %189 = vmatprep.subr.mxu0 0.0
  %190 = vmatpush1.msra.mxu0 0.0
  %191 = vmatprep.subr.mxu0 0.0
  %192 = vmatpush1.msra.mxu0 0.0
  %193 = vmatprep.subr.mxu0 0.0
  %194 = vmatpush1.msra.mxu0 0.0
  %195 = vmatprep.subr.mxu0 0.0
  %196 = vmatpush1.msra.mxu0 0.0
  %197 = vmatprep.subr.mxu0 0.0
  %198 = vmatpush1.msra.mxu0 0.0
  %199 = vmatprep.subr.mxu0 0.0
  %200 = vmatpush1.msra.mxu0 %v159
  %201 = vmatprep.subr.mxu0 0.0
  %202 = vmatpush2.msra.mxu0 0.0
  %203 = vmatprep.subr.mxu0 0.0
  %204 = vmatpush2.msra.mxu0 0.0
  %205 = vmatprep.subr.mxu0 0.0
  %206 = vmatpush2.msra.mxu0 0.0
  %207 = vmatprep.subr.mxu0 0.0
  %208 = vmatpush2.msra.mxu0 0.0
  %209 = vmatprep.subr.mxu0 0.0
  %210 = vmatpush2.msra.mxu0 0.0
  %211 = vmatprep.subr.mxu0 0.0
  %212 = vmatpush2.msra.mxu0 0.0
  %213 = vmatprep.subr.mxu0 0.0
  %214 = vmatpush2.msra.mxu0 0.0
  %215 = vmatprep.subr.mxu0 0.0
  %216 = vmatpush2.msra.mxu0 0.0
  %217 = vmatprep.subr.mxu0 0.0
  %218 = vmatpush2.msra.mxu0 0.0
  %219 = vmatprep.subr.mxu0 0.0
  %220 = vmatpush2.msra.mxu0 0.0
  %221 = vmatprep.subr.mxu0 0.0
  %222 = vmatpush2.msra.mxu0 0.0
  %223 = vmatprep.subr.mxu0 0.0
  %224 = vmatpush2.msra.mxu0 0.0
  %225 = vmatprep.subr.mxu0 0.0
  %226 = vmatpush2.msra.mxu0 0.0
  %227 = vmatprep.subr.mxu0 0.0
  %228 = vmatpush2.msra.mxu0 0.0
  %229 = vmatprep.subr.mxu0 0.0
  %230 = vmatpush2.msra.mxu0 0.0
  %231 = vmatprep.subr.mxu0 0.0
  %232 = vmatpush2.msra.mxu0 0.0
  %233 = vmatprep.mubr.f32.mxu0 0.0
  %234 = vmatmul.mubr.f32.gmra.mxu0 %v161
  %v235 = vpop.f32.mrf.mxu0
  %v236 = vadd.f32 0.0, %v235
  %v237 = vpop.f32.mrf.mxu0
  %238 = vmatprep.mubr.f32.mxu0 0.0
  %239 = vmatmul.mubr.f32.gmra.mxu0 %v164
  %v240 = vpop.f32.mrf.mxu0
  %v241 = vadd.f32 0.0, %v240
  %v242 = vpop.f32.mrf.mxu0
  %243 = vmatprep.mubr.f32.mxu0 0.0
  %244 = vmatmul.mubr.f32.gmra.mxu0 %v167
  %v245 = vpop.f32.mrf.mxu0
  %v246 = vadd.f32 0.0, %v245
  %v247 = vpop.f32.mrf.mxu0
  %248 = vdwg.mxu0
  %250 = vrot.lane.b32.xlu0 %v241, 127
  %v251 = vpop.permute.xlu0 %250
  %v253 = vadd.f32 %v236, %v251
  %255 = vrot.lane.b32.xlu0 %v246, 126
  %v256 = vpop.permute.xlu0 %255
  %v258 = vadd.f32 %v253, %v256
  %vm259 = vcmask 15360
  %v260 = vsel %vm259, %v258, 0.0
  %261 = vadd.xlane.f32.xlu0 %v260
  %v262 = vpop.xlane.xlu0 %261
  %v263 = vrcp.pop 2.0
  %v264 = vmul.f32 %v262, %v263
  %v265 = vsub.f32 %v258, %v264
  %v266 = vmul.f32 %v265, %v265
  %v267 = vsel %vm259, %v266, 0.0
  %268 = vadd.xlane.f32.xlu0 %v267
  %v269 = vpop.xlane.xlu0 %268
  %v270 = vmul.f32 %v269, %v263
  %v271 = vadd.f32 %v270, 1e-05
  %v272 = vrsqrt.pop %v271
  %v273 = vmul.f32 %v26, %v272
  %v274 = vmul.f32 %v264, %v273
  %276 = vrot.lane.b32.xlu0 %v274, 1
  %v277 = vpop.permute.xlu0 %276
  %v279 = vsub.f32 %v26, %v277
  %281 = vset.pattern.permute.xlu0 2
  %282 = vperm.xlu0 %281, %v273
  %v283 = vpop.permute.xlu0 %282
  %v285 = vmul.f32 %v258, %v283
  %287 = vset.pattern.permute.xlu0 3
  %288 = vperm.xlu0 %287, %v279
  %v289 = vpop.permute.xlu0 %288
  %v291 = vadd.f32 %v285, %v289
  %v292 = vmax.f32 %v291, 0.0
  %v293 = vtanh.pop %v292
  %vm294 = vcmask 30720
  %295 = vst.msk [vmem:[%s2] sm:$0x7f] %vm294, %v159
  %296 = vst.msk [vmem:[%s3] sm:$0xff] %vm259, %v292
  %297 = vst.msk [vmem:[%s4] sm:$0xff] %vm259, %v293
  // Predicated region
  $region10: #{model_forward.1} parent=0 // pred_check
    _
  $region11: #{model_forward.1} parent=0 // pred_check_branch
    %299 = sbr.rel (0) target = $region13
  $region12: #{model_forward.1} parent=0 // pred_region
    _
  $region13: #{model_forward.1} parent=0 // pred_fallthru
    _
  // Predicated region
  $region14: #{model_forward.1} parent=0 // pred_check
    _
  $region15: #{model_forward.1} parent=0 // pred_check_branch
    %301 = sbr.rel (0) target = $region17
  $region16: #{model_forward.1} parent=0 // pred_region
    _
  $region17: #{model_forward.1} parent=0 // pred_fallthru
    _
  // Predicated region
  $region18: #{model_forward.1} parent=0 // pred_check
    _
  $region19: #{model_forward.1} parent=0 // pred_check_branch
    %303 = sbr.rel (0) target = $region21
  $region20: #{model_forward.1} parent=0 // pred_region
    _
  $region21: #{model_forward.1} parent=0 // pred_fallthru
    _
  // Predicated region
  $region22: #{model_forward.1} parent=0 // pred_check
    _
  $region23: #{model_forward.1} parent=0 // pred_check_branch
    %305 = sbr.rel (0) target = $region25
  $region24: #{model_forward.1} parent=0 // pred_region
    _
  $region25: #{model_forward.1} parent=0 // pred_fallthru
    _
  // Predicated region
  $region26: #{model_forward.1} parent=0 // pred_check
    _
  $region27: #{model_forward.1} parent=0 // pred_check_branch
    %307 = sbr.rel (0) target = $region29
  $region28: #{model_forward.1} parent=0 // pred_region
    _
  $region29: #{model_forward.1} parent=0 // pred_fallthru
    _
  // Predicated region
  $region30: #{model_forward.1} parent=0 // pred_check
    _
  $region31: #{model_forward.1} parent=0 // pred_check_branch
    %309 = sbr.rel (0) target = $region33
  $region32: #{model_forward.1} parent=0 // pred_region
    _
  $region33: #{model_forward.1} parent=0 // pred_fallthru
    _

</llo_original>
